<compile_context>
chip_gen: v7x
topology: tpu7x:2x2x1
jax: 0.10.0
libtpu: 0.0.40
codegen_flags: <defaults>
</compile_context>

<pallas_src>
import functools

import jax
import jax.numpy as jnp
from jax.experimental import pallas as pl
from jax.experimental.pallas import tpu as pltpu

EPSILON = 1.0

LANE = 128           # lane width of the flattened slab
ROW_ALIGN = 1024     # flat-stream pad granularity -> M is always a multiple of 8
BLOCK_ROWS = 4096    # (4096, 128) f32 block = 2 MiB per input per pipeline buffer
NUM_SPLITS = 2       # leading "parallel" axis: feeds both TensorCores on v7x


def _dice_kernel(p_ref, t_ref, o_ref, acc_ref, *,
                 blocks_per_split, block_rows, valid_rows, need_mask):
    """One grid step streams a (block_rows, 128) tile of predict/target.

    p_ref, t_ref : VMEM tiles (native dtype), shape (block_rows, 128)
    o_ref        : SMEM (1, 1) per-split partial intersection sum
    acc_ref      : VMEM (8, 128) f32 running partial sums (VPU-only per step)
    """
    i = pl.program_id(0)   # split index (parallel across TensorCores)
    j = pl.program_id(1)   # row-block within the split (reduction axis)

    @pl.when(j == 0)
    def _():
        acc_ref[...] = jnp.zeros_like(acc_ref)

    pre = jax.nn.sigmoid(p_ref[...].astype(jnp.float32))
    tar = t_ref[...].astype(jnp.float32)
    prod = pre * tar

    if need_mask:
        # Zero out rows past the true end of the slab (partial last block and
        # any clamped phantom block), using the *intended* global row index.
        row0 = (i * blocks_per_split + j) * block_rows
        rows = jax.lax.broadcasted_iota(jnp.int32, prod.shape, 0) + row0
        prod = jnp.where(rows < valid_rows, prod, 0.0)

    # Sublane-preserving partial reduction: (block_rows, 128) -> (8, 128).
    # Pure vreg adds on the VPU; no cross-lane work in the steady state.
    acc_ref[...] += prod.reshape(-1, 8, LANE).sum(axis=0)

    @pl.when(j == pl.num_programs(1) - 1)
    def _():
        # One cross-lane/sublane reduction per split, at the very end.
        o_ref[0, 0] = jnp.sum(acc_ref[...])


@jax.jit
def dice_loss(predict, target):
    assert predict.shape == target.shape, (
        "the size of predict and target must be equal.")

    total = predict.size
    p = predict.reshape(-1)
    t = target.reshape(-1)

    # Pad the flat stream only when it is not already aligned (rare for CNN
    # feature maps).  Zero padding is numerically inert: sigmoid(0) * 0 == 0.
    rem = total % ROW_ALIGN
    if rem:
        pad = ROW_ALIGN - rem
        p = jnp.pad(p, (0, pad))
        t = jnp.pad(t, (0, pad))

    m = p.size // LANE                       # rows of the (M, 128) slab; M % 8 == 0
    p2 = p.reshape(m, LANE)
    t2 = t.reshape(m, LANE)

    br = min(BLOCK_ROWS, m)                  # block rows (always a multiple of 8)
    tb = (m + br - 1) // br                  # total row-blocks
    s = NUM_SPLITS if tb >= NUM_SPLITS else 1
    k = (tb + s - 1) // s                    # row-blocks per split
    need_mask = (s * k * br != m)            # partial last block / phantom block

    kernel = functools.partial(
        _dice_kernel,
        blocks_per_split=k, block_rows=br, valid_rows=m, need_mask=need_mask)

    def in_map(i, j):
        # Clamp phantom blocks (when tb is not a multiple of s) onto the last
        # valid block; their contribution is zeroed by the in-kernel mask.
        return (jnp.minimum(i * k + j, tb - 1), 0)

    partials = pl.pallas_call(
        kernel,
        out_shape=jax.ShapeDtypeStruct((s, 1), jnp.float32),
        grid_spec=pltpu.PrefetchScalarGridSpec(
            num_scalar_prefetch=0,
            grid=(s, k),
            in_specs=[
                pl.BlockSpec((br, LANE), in_map),
                pl.BlockSpec((br, LANE), in_map),
            ],
            out_specs=pl.BlockSpec((1, 1), lambda i, j: (i, 0),
                                   memory_space=pltpu.SMEM),
            scratch_shapes=[pltpu.VMEM((8, LANE), jnp.float32)],
        ),
        compiler_params=pltpu.CompilerParams(
            dimension_semantics=("parallel", "arbitrary"),
            vmem_limit_bytes=32 * 1024 * 1024,
        ),
    )(p2, t2)

    intersection = jnp.sum(partials)
    # union = (pre + tar).sum() is computed in the torch reference but never
    # used by the score, so it is intentionally not materialized here.
    return 1.0 - 2.0 * (intersection + jnp.float32(EPSILON))


def dice_loss_ref(predict, target):
    n = predict.shape[0]
    pre = jax.nn.sigmoid(predict.astype(jnp.float32)).reshape(n, -1)
    tar = target.astype(jnp.float32).reshape(n, -1)
    intersection = (pre * tar).sum(-1).sum()
    union = (pre + tar).sum(-1).sum()  # noqa: F841  (unused, as in the torch code)
    return 1.0 - 2.0 * (intersection + EPSILON)


if __name__ == "__main__":
    key = jax.random.PRNGKey(0)
    k1, k2, k3, k4 = jax.random.split(key, 4)

    # Small NCHW case (matches the module's typical usage), single grid step.
    predict = jax.random.normal(k1, (2, 4, 16, 16), dtype=jnp.float32)
    target = (jax.random.uniform(k2, (2, 4, 16, 16)) > 0.5).astype(jnp.float32)

    score = dice_loss(predict, target)
    jax.block_until_ready(score)
    ref = dice_loss_ref(predict, target)
    assert jnp.allclose(score, ref, rtol=1e-5, atol=1e-3), (score, ref)

    # Larger case exercising the two-split parallel axis and the ragged-block
    # row mask (M = 4608 rows, block = 4096 rows).
    predict2 = jax.random.normal(k3, (2, 8, 192, 192), dtype=jnp.float32)
    target2 = (jax.random.uniform(k4, (2, 8, 192, 192)) > 0.5).astype(jnp.float32)

    score2 = dice_loss(predict2, target2)
    jax.block_until_ready(score2)
    ref2 = dice_loss_ref(predict2, target2)
    assert jnp.allclose(score2, ref2, rtol=5e-5, atol=1e-2), (score2, ref2)

    print("KERNEL_OK")
</pallas_src>

<mosaic_0001>
module attributes {stable_mosaic.version = 11 : i64} {
  func.func @_dice_kernel(%arg0: i32, %arg1: i32, %arg2: memref<16x128xf32, #tpu.memory_space<vmem>>, %arg3: memref<16x128xf32, #tpu.memory_space<vmem>>, %arg4: memref<1x1xf32, #tpu.memory_space<smem>>, %arg5: memref<8x128xf32, #tpu.memory_space<vmem>>) attributes {dimension_semantics = [#tpu.dimension_semantics<parallel>, #tpu.dimension_semantics<arbitrary>], iteration_bounds = array<i64: 1, 1>, scalar_prefetch = 0 : i64, scratch_operands = 1 : i64, tpu.core_type = #tpu.core_type<tc>, window_params = [{transform_indices = @transform_0, window_bounds = array<i64: 16, 128>}, {transform_indices = @transform_1, window_bounds = array<i64: 16, 128>}, {transform_indices = @transform_2, window_bounds = array<i64: 1, 1>}]} {
    %c0_i32 = arith.constant 0 : i32
    %0 = arith.cmpi eq, %arg1, %c0_i32 : i32
    %1 = arith.extui %0 : i1 to i32
    %c0_i32_0 = arith.constant 0 : i32
    %2 = arith.cmpi ne, %1, %c0_i32_0 : i32
    scf.if %2 {
      %cst_11 = arith.constant 0.000000e+00 : f32
      %19 = vector.broadcast %cst_11 : f32 to vector<8x128xf32>
      %c0_12 = arith.constant 0 : index
      %c0_13 = arith.constant 0 : index
      %20 = vector.load %arg5[%c0_12, %c0_13] : memref<8x128xf32, #tpu.memory_space<vmem>>, vector<8x128xf32>
      tpu.vector_store %arg5[%c0_12, %c0_13], %19 {strides = array<i32>} : memref<8x128xf32, #tpu.memory_space<vmem>>, vector<8x128xf32>,
    } else {
    }
    %c0 = arith.constant 0 : index
    %c0_1 = arith.constant 0 : index
    %3 = vector.load %arg2[%c0, %c0_1] : memref<16x128xf32, #tpu.memory_space<vmem>>, vector<16x128xf32>
    %4 = arith.negf %3 : vector<16x128xf32>
    %5 = math.exp %4 : vector<16x128xf32>
    %cst = arith.constant 1.000000e+00 : f32
    %6 = vector.broadcast %cst : f32 to vector<16x128xf32>
    %7 = arith.addf %6, %5 : vector<16x128xf32>
    %8 = arith.divf %6, %7 : vector<16x128xf32>
    %c0_2 = arith.constant 0 : index
    %c0_3 = arith.constant 0 : index
    %9 = vector.load %arg3[%c0_2, %c0_3] : memref<16x128xf32, #tpu.memory_space<vmem>>, vector<16x128xf32>
    %10 = arith.mulf %8, %9 : vector<16x128xf32>
    %c0_4 = arith.constant 0 : index
    %c0_5 = arith.constant 0 : index
    %11 = vector.load %arg5[%c0_4, %c0_5] : memref<8x128xf32, #tpu.memory_space<vmem>>, vector<8x128xf32>
    %12 = vector.shape_cast %10 : vector<16x128xf32> to vector<2x8x128xf32>
    %cst_6 = arith.constant dense<0.000000e+00> : vector<8x128xf32>
    %13 = vector.multi_reduction <add>, %12, %cst_6 [0] : vector<2x8x128xf32> to vector<8x128xf32>
    %14 = arith.addf %11, %13 : vector<8x128xf32>
    %c0_7 = arith.constant 0 : index
    %c0_8 = arith.constant 0 : index
    %15 = vector.load %arg5[%c0_7, %c0_8] : memref<8x128xf32, #tpu.memory_space<vmem>>, vector<8x128xf32>
    tpu.vector_store %arg5[%c0_7, %c0_8], %14 {strides = array<i32>} : memref<8x128xf32, #tpu.memory_space<vmem>>, vector<8x128xf32>,
    %c0_i32_9 = arith.constant 0 : i32
    %16 = arith.cmpi eq, %arg1, %c0_i32_9 : i32
    %17 = arith.extui %16 : i1 to i32
    %c0_i32_10 = arith.constant 0 : i32
    %18 = arith.cmpi ne, %17, %c0_i32_10 : i32
    scf.if %18 {
      %c0_11 = arith.constant 0 : index
      %c0_12 = arith.constant 0 : index
      %19 = vector.load %arg5[%c0_11, %c0_12] : memref<8x128xf32, #tpu.memory_space<vmem>>, vector<8x128xf32>
      %20 = vector.shape_cast %19 : vector<8x128xf32> to vector<1x8x128xf32>
      %cst_13 = arith.constant dense<0.000000e+00> : vector<1xf32>
      %21 = vector.multi_reduction <add>, %20, %cst_13 [1, 2] : vector<1x8x128xf32> to vector<1xf32>
      %22 = vector.shape_cast %21 : vector<1xf32> to vector<1x1x1xf32>
      %23 = vector.extract %22[0, 0, 0] : f32 from vector<1x1x1xf32>
      %c0_14 = arith.constant 0 : index
      %c0_15 = arith.constant 0 : index
      %24 = memref.load %arg4[%c0_14, %c0_15] : memref<1x1xf32, #tpu.memory_space<smem>>
      memref.store %23, %arg4[%c0_14, %c0_15] : memref<1x1xf32, #tpu.memory_space<smem>>
    } else {
    }
    return
  }
  func.func @transform_0(%arg0: i32, %arg1: i32) -> (i32, i32) {
    %c1_i32 = arith.constant 1 : i32
    %0 = arith.muli %arg0, %c1_i32 : i32
    %1 = arith.addi %0, %arg1 : i32
    %c0_i32 = arith.constant 0 : i32
    %2 = arith.minsi %1, %c0_i32 : i32
    %c0_i32_0 = arith.constant 0 : i32
    %c0_i32_1 = arith.constant 0 : i32
    return %2, %c0_i32_0 : i32, i32
  }
  func.func @transform_1(%arg0: i32, %arg1: i32) -> (i32, i32) {
    %c1_i32 = arith.constant 1 : i32
    %0 = arith.muli %arg0, %c1_i32 : i32
    %1 = arith.addi %0, %arg1 : i32
    %c0_i32 = arith.constant 0 : i32
    %2 = arith.minsi %1, %c0_i32 : i32
    %c0_i32_0 = arith.constant 0 : i32
    %c0_i32_1 = arith.constant 0 : i32
    return %2, %c0_i32_0 : i32, i32
  }
  func.func @transform_2(%arg0: i32, %arg1: i32) -> (i32, i32) {
    %c0_i32 = arith.constant 0 : i32
    %c0_i32_0 = arith.constant 0 : i32
    return %arg0, %c0_i32 : i32, i32
  }
}

</mosaic_0001>

<llo_original>
// kernel: dice_loss.1
$region0: #{dice_loss.1}
  #allocation0 [shape = 'u32[]', space=smem, size = 0x4, offset = 0x4, fixed_abs, tag = 'smem constant byte address 0x4 - core index']
  #allocation1 [shape = 'u32[144,128]{1,0:T(1,128)}', space=vmem, size = 0x12000, scoped, tag = 'internal scratch']
  #allocation2 [shape = 'f32[8,128]{1,0:T(8,128)}', space=vmem, size = 0x1000, scoped, tag = 'scratch operand']
  %s0 = inlined_call_operand.vmem [shape: f32[16,128], index: 0, kind: input, shape index: {}]
  %s1 = inlined_call_operand.vmem [shape: f32[16,128], index: 1, kind: input, shape index: {}]
  %s2 = inlined_call_operand.hbm [shape: f32[1,1], index: 2, kind: output, shape index: {}]
  %s3 = sld [smem:[#allocation0]]
  $region26: #{dice_loss.1} parent=0
    _
  %s5 = ssub.s32 1, %s3
  %s6 = scalar_select 0, %s5, %s3
  $region1: #{dice_loss.1} parent=0
    #allocation3 [shape = 'u8[512]{0}', space=smem, size = 0x200, scoped, tag = 'output window, operand 0, single buffered']
    #allocation4 [shape = 's32[1]{0}', space=sflag, size = 0x4, scoped, tag = 'scoped memory for dice_loss.1']
    %7 = vsyncpa [#allocation4], 0
    // Predicated region
    $region2: #{dice_loss.1} parent=1 // pred_check
      _
    $region3: #{dice_loss.1} parent=1 // pred_check_branch
      %9 = sbr.rel (0) target = $region5
    $region4: #{dice_loss.1} parent=1 // pred_region
      %s10 = sadd.s32 0, 0
      %p11 = scmp.lt.s32.totalorder %s10, 0
      %s12 = scalar_select %p11, %s10, 0
      %s13 = smul.u32 2, %s12
      %p14 = scmp.lt.s32.totalorder %s13, 1
      %s15 = scalar_select %p14, %s13, 1
      %s16 = smul.addr %s15, 8
      %s17 = scalar_lea.vmem %s0, %s16
      %s18 = sadd.s32 0, 0
      %p19 = scmp.lt.s32.totalorder %s18, 0
      %s20 = scalar_select %p19, %s18, 0
      %s21 = smul.u32 2, %s20
    $region5: #{dice_loss.1} parent=1 // pred_fallthru
      _
    // Predicated region
    $region6: #{dice_loss.1} parent=1 // pred_check
      _
    $region7: #{dice_loss.1} parent=1 // pred_check_branch
      %23 = sbr.rel (0) target = $region9
    $region8: #{dice_loss.1} parent=1 // pred_region
      %s24 = sadd.s32 0, 0
      %p25 = scmp.lt.s32.totalorder %s24, 0
      %s26 = scalar_select %p25, %s24, 0
      %s27 = smul.u32 2, %s26
      %p28 = scmp.lt.s32.totalorder %s27, 1
      %s29 = scalar_select %p28, %s27, 1
      %s30 = smul.addr %s29, 8
      %s31 = scalar_lea.vmem %s1, %s30
      %s32 = sadd.s32 0, 0
      %p33 = scmp.lt.s32.totalorder %s32, 0
      %s34 = scalar_select %p33, %s32, 0
      %s35 = smul.u32 2, %s34
    $region9: #{dice_loss.1} parent=1 // pred_fallthru
      _
    %s36 = sadd.s32 0, 0
    %p37 = scmp.lt.s32.totalorder %s36, 0
    %s38 = scalar_select %p37, %s36, 0
    %s39 = smul.u32 2, %s38
    %p40 = scmp.lt.s32.totalorder %s39, 1
    %s41 = scalar_select %p40, %s39, 1
    %s42 = smul.addr %s41, 8
    %s43 = scalar_lea.vmem %s0, %s42
    %s44 = sadd.s32 0, 0
    %p45 = scmp.lt.s32.totalorder %s44, 0
    %s46 = scalar_select %p45, %s44, 0
    %s47 = smul.u32 2, %s46
    %p48 = scmp.lt.s32.totalorder %s47, 1
    %s49 = scalar_select %p48, %s47, 1
    %s50 = smul.addr %s49, 8
    %s51 = scalar_lea.vmem %s1, %s50
    %s52 = sadd.s32 0, 0
    %p53 = scmp.lt.s32.totalorder %s52, 0
    %s54 = scalar_select %p53, %s52, 0
    %s55 = smul.u32 2, %s54
    %p56 = scmp.lt.s32.totalorder %s55, 1
    %s57 = scalar_select %p56, %s55, 1
    %s58 = smul.addr %s57, 8
    %s59 = scalar_lea.vmem %s0, %s58
    %s60 = sadd.s32 0, 0
    %p61 = scmp.lt.s32.totalorder %s60, 0
    %s62 = scalar_select %p61, %s60, 0
    %s63 = smul.u32 2, %s62
    %s64 = sadd.s32 0, 0
    %p65 = scmp.lt.s32.totalorder %s64, 0
    %s66 = scalar_select %p65, %s64, 0
    %s67 = smul.u32 2, %s66
    %p68 = scmp.lt.s32.totalorder %s67, 1
    %s69 = scalar_select %p68, %s67, 1
    %s70 = smul.addr %s69, 8
    %s71 = scalar_lea.vmem %s1, %s70
    %s72 = sadd.s32 0, 0
    %p73 = scmp.lt.s32.totalorder %s72, 0
    %s74 = scalar_select %p73, %s72, 0
    %s75 = smul.u32 2, %s74
    %p76 = scmp.eq.s32.totalorder 0, 0
    // Predicated region
    $region10: #{dice_loss.1} parent=1 // pred_check
      %p77 = pneg %p76
    $region11: #{dice_loss.1} parent=1 // pred_check_branch
      %79 = sbr.rel (%p77) target = $region13
    $region12: #{dice_loss.1} parent=1 // pred_region
      %80 = vst [vmem:[#allocation2] sm:$0xff] 0.0
    $region13: #{dice_loss.1} parent=1 // pred_fallthru
      _
    %v81 = vld [vmem:[%s59] sm:$0xff]
    %v82 = vld [vmem:[%s59 + $0x8] sm:$0xff]
    %v83 = vxor.u32 %v81, 2147483648
    %v84 = vxor.u32 %v82, 2147483648
    %v85 = vmul.f32 %v83, 1.442695
    %v86 = vpow.pop %v85
    %v87 = vmul.f32 %v84, 1.442695
    %v88 = vpow.pop %v87
    %v89 = vadd.f32 %v86, 1.0
    %v90 = vadd.f32 %v88, 1.0
    %v91 = vrcp.pop %v89
    %v92 = vmul.f32 1.0, %v91
    %v93 = vrcp.pop %v90
    %v94 = vmul.f32 1.0, %v93
    %v95 = vld [vmem:[%s71] sm:$0xff]
    %v96 = vld [vmem:[%s71 + $0x8] sm:$0xff]
    %v97 = vmul.f32 %v92, %v95
    %v98 = vmul.f32 %v94, %v96
    %v99 = vld [vmem:[#allocation2] sm:$0xff]
    %v100 = vadd.f32 %v97, %v98
    %v101 = vadd.f32 %v99, %v100
    %102 = vst [vmem:[#allocation2] sm:$0xff] %v101
    // Predicated region
    $region14: #{dice_loss.1} parent=1 // pred_check
      %p103 = pneg %p76
    $region15: #{dice_loss.1} parent=1 // pred_check_branch
      %105 = sbr.rel (%p103) target = $region17
    $region16: #{dice_loss.1} parent=1 // pred_region
      %v106 = vld [vmem:[#allocation2] sm:$0xff]
      %107 = vadd.xlane.f32.xlu0 %v106
      %v108 = vpop.xlane.xlu0 %107
      %v109 = vrot.slane %v108, 4
      %v110 = vadd.f32 %v108, %v109
      %v111 = vrot.slane %v110, 2
      %v112 = vadd.f32 %v110, %v111
      %v113 = vrot.slane %v112, 1
      %v114 = vadd.f32 %v112, %v113
      %s115 = vtos %v114
      %s116 = scalar_lea.smem [#allocation3], 0
      %117 = sst [smem:[%s116]] %s115
    $region17: #{dice_loss.1} parent=1 // pred_fallthru
      _
    // Predicated region
    $region18: #{dice_loss.1} parent=1 // pred_check
      _
    $region19: #{dice_loss.1} parent=1 // pred_check_branch
      %119 = sbr.rel (0) target = $region21
    $region20: #{dice_loss.1} parent=1 // pred_region
      %s121 = ssub.s32 16, 16
      %122 = vsyncadd [#allocation4], %s121
      %125 = dma.smem_to_hbm [#allocation3], 16, %s2, [#allocation4]
    $region21: #{dice_loss.1} parent=1 // pred_fallthru
      _
    // Predicated region
    $region22: #{dice_loss.1} parent=1 // pred_check
      _
    $region23: #{dice_loss.1} parent=1 // pred_check_branch
      %127 = sbr.rel (0) target = $region25
    $region24: #{dice_loss.1} parent=1 // pred_region
      %128 = dma.done [#allocation4], 16
    $region25: #{dice_loss.1} parent=1 // pred_fallthru
      _
    %129 = sfence
    %130 = vsyncpa [#allocation4], 1

</llo_original>
